<compile_context>
chip_gen: v5e
topology: v5e:2x2
jax: 0.10.0
libtpu: 0.0.40
codegen_flags: <defaults>
</compile_context>

<pallas_src>
import functools

import jax
import jax.numpy as jnp
from jax import lax
from jax.experimental import pallas as pl
from jax.experimental.pallas import tpu as pltpu


def _pooler_kernel(x_ref, gamma_ref, beta_ref, o_ref, *, num_patch, eps):
    # x_ref: (TILE_BT, L, C) slab; each row is one (b, t) token slab.
    # Promote to f32 so bf16 inputs still accumulate mean/variance in f32
    # (the VMEM budget in the wrapper accounts for a possible f32 temporary).
    x = x_ref[...].astype(jnp.float32)

    # Masked reduction over L: keep tokens [1, 1 + num_patch) — i.e. drop the
    # CLS token (index 0) and the trailing prompt tokens.  Full-tile
    # select + reduce keeps loads aligned (no shifted sublane slice).
    # TODO(synk): assumes prompt tokens are strictly trailing (matches module).
    L = x.shape[1]
    tok = lax.broadcasted_iota(jnp.int32, (1, L, 1), 1)
    mask = (tok >= 1) & (tok < 1 + num_patch)
    pooled = jnp.sum(jnp.where(mask, x, 0.0), axis=1) * (1.0 / num_patch)  # (TILE_BT, C)

    # LayerNorm over C (biased variance, torch.nn.LayerNorm semantics).
    mu = jnp.mean(pooled, axis=-1, keepdims=True)
    var = jnp.mean((pooled - mu) ** 2, axis=-1, keepdims=True)
    normed = (pooled - mu) * lax.rsqrt(var + eps)
    out = normed * gamma_ref[...] + beta_ref[...]        # (1, C) broadcast
    o_ref[...] = out.astype(o_ref.dtype)


def _round_up(x, m):
    return (x + m - 1) // m * m


def _vmem_limit_bytes():
    """Per-generation scoped-VMEM limit: ~75% of physical capacity.

    v5e/v6e: 128 MiB physical -> 96 MiB limit; v7x: 64 MiB -> 48 MiB.
    Falls back to the smallest generation (v7x) if the query fails.
    """
    cap = 64 * 1024 * 1024
    try:
        info = pltpu.get_tpu_info()
        cap = int(getattr(info, "vmem_capacity_bytes", cap))
    except Exception:
        pass
    return (cap * 3) // 4


def beit_pooler_3d(hidden_states, gamma, beta, *, num_prompts, eps=1e-12,
                   use_mean_pooling=True):
    """JAX/Pallas port of BeitPooler3D.forward.

    hidden_states: [B, T, L, C] (f32 or bf16)
    gamma, beta:   [C] LayerNorm affine params
    eps:           pass the model's layer_norm_eps (BEiT default 1e-12)
    returns:       [B, T, C] in hidden_states.dtype
    """
    B, T, L, C = hidden_states.shape

    if not use_mean_pooling:
        # else-branch of the module: just the CLS token (pure slicing).
        return hidden_states[:, :, 0]

    num_patch = L - 1 - num_prompts
    assert num_patch > 0, "need at least one patch token"

    BT = B * T
    x = hidden_states.reshape(BT, L, C)
    gamma2 = gamma.reshape(1, C).astype(jnp.float32)
    beta2 = beta.reshape(1, C).astype(jnp.float32)

    # --- Tile sizing (per-generation VMEM budget) ---------------------------
    itemsize = jnp.dtype(hidden_states.dtype).itemsize
    in_row = L * C * itemsize                 # one (b, t) row of the input block
    f32_row = L * C * 4                       # possible f32 temporary in-kernel
    out_row = C * max(itemsize, 4)            # output row (double-buffered, tiny)
    # Working set per tile row: 2x double-buffered input + 1x f32 temp
    # + 2x output (+ resident gamma/beta, negligible).
    row_cost = 2 * in_row + f32_row + 2 * out_row

    vmem_limit = _vmem_limit_bytes()
    reserve = 2 * 1024 * 1024                 # gamma/beta + compiler scratch headroom
    usable = max(vmem_limit - reserve, 1 << 20)
    tile = max(8, (usable // row_cost // 8) * 8)   # multiple of 8 sublanes
    tile = min(tile, _round_up(BT, 8))             # don't exceed (padded) row count

    # Keep enough grid steps for pipeline overlap and (v7x) both TensorCores:
    # aim for >= 8 steps when there is plenty of work, >= 2 otherwise.
    if BT >= 64:
        min_steps = 8
    elif BT >= 16:
        min_steps = 2
    else:
        min_steps = 1
    if min_steps > 1:
        step_cap = max(8, ((BT // min_steps) // 8) * 8)
        tile = min(tile, step_cap)

    steps = pl.cdiv(BT, tile)
    # Prefer an even step count so v7x's two TensorCores split the grid evenly.
    if steps > 1 and steps % 2 == 1:
        tile2 = max(8, _round_up(pl.cdiv(BT, steps + 1), 8))
        if pl.cdiv(BT, tile2) % 2 == 0:
            tile = tile2
            steps = pl.cdiv(BT, tile)
    grid = (steps,)

    # TODO(synk): if C < 128 the output store is a masked partial store
    # (vst.msk); fine for toy shapes, irrelevant for C=768/1024 production.
    # TODO(synk): if num_prompts were a large fraction of L, slicing trailing
    # prompts off before the pallas_call would save proportional HBM reads.

    kernel = functools.partial(_pooler_kernel, num_patch=num_patch, eps=eps)

    out = pl.pallas_call(
        kernel,
        out_shape=jax.ShapeDtypeStruct((BT, C), hidden_states.dtype),
        grid_spec=pltpu.PrefetchScalarGridSpec(
            num_scalar_prefetch=0,
            grid=grid,
            in_specs=[
                pl.BlockSpec((tile, L, C), lambda i: (i, 0, 0)),
                pl.BlockSpec((1, C), lambda i: (0, 0)),   # gamma: resident in VMEM
                pl.BlockSpec((1, C), lambda i: (0, 0)),   # beta:  resident in VMEM
            ],
            out_specs=pl.BlockSpec((tile, C), lambda i: (i, 0)),
        ),
        compiler_params=pltpu.CompilerParams(
            dimension_semantics=("parallel",),
            vmem_limit_bytes=int(vmem_limit)),
    )(x, gamma2, beta2)

    return out.reshape(B, T, C)


def _reference(hidden_states, gamma, beta, num_prompts, eps=1e-12):
    if num_prompts > 0:
        patch = hidden_states[:, :, 1:-num_prompts, :]
    else:
        patch = hidden_states[:, :, 1:, :]
    pooled = patch.astype(jnp.float32).mean(axis=2)
    mu = pooled.mean(axis=-1, keepdims=True)
    var = ((pooled - mu) ** 2).mean(axis=-1, keepdims=True)
    return ((pooled - mu) / jnp.sqrt(var + eps) * gamma + beta).astype(
        hidden_states.dtype)


if __name__ == "__main__":
    # Small config: hidden_size=32, add_k_prompts=2, use_mean_pooling=True
    B, T, C = 2, 4, 32
    num_prompts = 2
    L = 1 + 8 + num_prompts  # CLS + 8 patch tokens + prompt tokens

    key = jax.random.PRNGKey(0)
    k_x, k_g, k_b = jax.random.split(key, 3)
    hidden_states = jax.random.normal(k_x, (B, T, L, C), dtype=jnp.float32)
    gamma = 1.0 + 0.1 * jax.random.normal(k_g, (C,), dtype=jnp.float32)
    beta = 0.1 * jax.random.normal(k_b, (C,), dtype=jnp.float32)

    out = beit_pooler_3d(hidden_states, gamma, beta, num_prompts=num_prompts)
    out = jax.block_until_ready(out)

    ref = _reference(hidden_states, gamma, beta, num_prompts)
    assert out.shape == (B, T, C), out.shape
    assert jnp.allclose(out, ref, atol=1e-5, rtol=1e-5), (
        float(jnp.max(jnp.abs(out - ref))))

    # Also exercise the use_mean_pooling=False (CLS token) branch.
    cls_out = beit_pooler_3d(hidden_states, gamma, beta,
                             num_prompts=num_prompts, use_mean_pooling=False)
    assert jnp.allclose(cls_out, hidden_states[:, :, 0])

    print("KERNEL_OK")
</pallas_src>

<mosaic_0001>
module attributes {stable_mosaic.version = 11 : i64} {
  func.func @_pooler_kernel(%arg0: i32, %arg1: memref<8x11x32xf32, #tpu.memory_space<vmem>>, %arg2: memref<1x32xf32, #tpu.memory_space<vmem>>, %arg3: memref<1x32xf32, #tpu.memory_space<vmem>>, %arg4: memref<8x32xf32, #tpu.memory_space<vmem>>) attributes {dimension_semantics = [#tpu.dimension_semantics<parallel>], iteration_bounds = array<i64: 1>, scalar_prefetch = 0 : i64, scratch_operands = 0 : i64, tpu.core_type = #tpu.core_type<tc>, window_params = [{transform_indices = @transform_0, window_bounds = array<i64: 8, 11, 32>}, {pipeline_mode = #tpu.pipeline_mode<synchronous>, transform_indices = @transform_1, window_bounds = array<i64: 1, 32>}, {pipeline_mode = #tpu.pipeline_mode<synchronous>, transform_indices = @transform_2, window_bounds = array<i64: 1, 32>}, {transform_indices = @transform_3, window_bounds = array<i64: 8, 32>}]} {
    %c0 = arith.constant 0 : index
    %c0_0 = arith.constant 0 : index
    %c0_1 = arith.constant 0 : index
    %0 = vector.load %arg1[%c0, %c0_0, %c0_1] : memref<8x11x32xf32, #tpu.memory_space<vmem>>, vector<8x11x32xf32>
    %1 = tpu.iota {dimensions = array<i32: 1>} : vector<1x11x1xi32>
    %c1_i32 = arith.constant 1 : i32
    %2 = vector.broadcast %c1_i32 : i32 to vector<1x11x1xi32>
    %3 = arith.cmpi sge, %1, %2 : vector<1x11x1xi32>
    %c9_i32 = arith.constant 9 : i32
    %4 = vector.broadcast %c9_i32 : i32 to vector<1x11x1xi32>
    %5 = arith.cmpi slt, %1, %4 : vector<1x11x1xi32>
    %6 = arith.andi %3, %5 : vector<1x11x1xi1>
    %cst = arith.constant 0.000000e+00 : f32
    %7 = vector.shape_cast %6 : vector<1x11x1xi1> to vector<1x11x1xi1>
    %8 = vector.broadcast %7 : vector<1x11x1xi1> to vector<8x11x32xi1>
    %9 = vector.broadcast %cst : f32 to vector<8x11x32xf32>
    %10 = arith.select %8, %0, %9 : vector<8x11x32xi1>, vector<8x11x32xf32>
    %cst_2 = arith.constant dense<0.000000e+00> : vector<8x32xf32>
    %11 = vector.multi_reduction <add>, %10, %cst_2 [1] : vector<8x11x32xf32> to vector<8x32xf32>
    %cst_3 = arith.constant 1.250000e-01 : f32
    %12 = vector.broadcast %cst_3 : f32 to vector<8x32xf32>
    %13 = arith.mulf %11, %12 : vector<8x32xf32>
    %cst_4 = arith.constant dense<0.000000e+00> : vector<8xf32>
    %14 = vector.multi_reduction <add>, %13, %cst_4 [1] : vector<8x32xf32> to vector<8xf32>
    %15 = vector.shape_cast %14 : vector<8xf32> to vector<8x1xf32>
    %cst_5 = arith.constant 3.200000e+01 : f32
    %16 = vector.broadcast %cst_5 : f32 to vector<8x1xf32>
    %17 = arith.divf %15, %16 : vector<8x1xf32>
    %18 = vector.broadcast %17 : vector<8x1xf32> to vector<8x32xf32>
    %19 = arith.subf %13, %18 : vector<8x32xf32>
    %20 = arith.mulf %19, %19 : vector<8x32xf32>
    %cst_6 = arith.constant dense<0.000000e+00> : vector<8xf32>
    %21 = vector.multi_reduction <add>, %20, %cst_6 [1] : vector<8x32xf32> to vector<8xf32>
    %22 = vector.shape_cast %21 : vector<8xf32> to vector<8x1xf32>
    %cst_7 = arith.constant 3.200000e+01 : f32
    %23 = vector.broadcast %cst_7 : f32 to vector<8x1xf32>
    %24 = arith.divf %22, %23 : vector<8x1xf32>
    %25 = vector.broadcast %17 : vector<8x1xf32> to vector<8x32xf32>
    %26 = arith.subf %13, %25 : vector<8x32xf32>
    %cst_8 = arith.constant 9.99999996E-13 : f32
    %27 = vector.broadcast %cst_8 : f32 to vector<8x1xf32>
    %28 = arith.addf %24, %27 : vector<8x1xf32>
    %29 = math.rsqrt %28 : vector<8x1xf32>
    %30 = vector.broadcast %29 : vector<8x1xf32> to vector<8x32xf32>
    %31 = arith.mulf %26, %30 : vector<8x32xf32>
    %c0_9 = arith.constant 0 : index
    %c0_10 = arith.constant 0 : index
    %32 = vector.load %arg2[%c0_9, %c0_10] : memref<1x32xf32, #tpu.memory_space<vmem>>, vector<1x32xf32>
    %33 = vector.broadcast %32 : vector<1x32xf32> to vector<8x32xf32>
    %34 = arith.mulf %31, %33 : vector<8x32xf32>
    %c0_11 = arith.constant 0 : index
    %c0_12 = arith.constant 0 : index
    %35 = vector.load %arg3[%c0_11, %c0_12] : memref<1x32xf32, #tpu.memory_space<vmem>>, vector<1x32xf32>
    %36 = vector.broadcast %35 : vector<1x32xf32> to vector<8x32xf32>
    %37 = arith.addf %34, %36 : vector<8x32xf32>
    %c0_13 = arith.constant 0 : index
    %c0_14 = arith.constant 0 : index
    %38 = vector.load %arg4[%c0_13, %c0_14] : memref<8x32xf32, #tpu.memory_space<vmem>>, vector<8x32xf32>
    tpu.vector_store %arg4[%c0_13, %c0_14], %37 {strides = array<i32>} : memref<8x32xf32, #tpu.memory_space<vmem>>, vector<8x32xf32>,
    return
  }
  func.func @transform_0(%arg0: i32) -> (i32, i32, i32) {
    %c0_i32 = arith.constant 0 : i32
    %c0_i32_0 = arith.constant 0 : i32
    %c0_i32_1 = arith.constant 0 : i32
    return %arg0, %c0_i32, %c0_i32_0 : i32, i32, i32
  }
  func.func @transform_1(%arg0: i32) -> (i32, i32) {
    %c0_i32 = arith.constant 0 : i32
    %c0_i32_0 = arith.constant 0 : i32
    %c0_i32_1 = arith.constant 0 : i32
    return %c0_i32, %c0_i32_0 : i32, i32
  }
  func.func @transform_2(%arg0: i32) -> (i32, i32) {
    %c0_i32 = arith.constant 0 : i32
    %c0_i32_0 = arith.constant 0 : i32
    %c0_i32_1 = arith.constant 0 : i32
    return %c0_i32, %c0_i32_0 : i32, i32
  }
  func.func @transform_3(%arg0: i32) -> (i32, i32) {
    %c0_i32 = arith.constant 0 : i32
    %c0_i32_0 = arith.constant 0 : i32
    return %arg0, %c0_i32 : i32, i32
  }
}

</mosaic_0001>

<llo_original>
// kernel: tpu_custom_call.1
$region0: #{tpu_custom_call.1}
  #allocation0 [shape = 'u32[]', space=smem, size = 0x4, offset = 0x4, fixed_abs, tag = 'smem constant byte address 0x4 - core index']
  #allocation1 [shape = 'u32[72,128]{1,0:T(1,128)}', space=vmem, size = 0x9000, scoped, tag = 'internal scratch']
  %s0 = inlined_call_operand.vmem [shape: f32[8,11,32], index: 0, kind: input, shape index: {}]
  %s1 = inlined_call_operand.vmem [shape: f32[1,32], index: 1, kind: input, shape index: {}]
  %s2 = inlined_call_operand.vmem [shape: f32[1,32], index: 2, kind: input, shape index: {}]
  %s3 = inlined_call_operand.hbm [shape: f32[8,32], index: 3, kind: output, shape index: {}]
  %s4 = sld [smem:[#allocation0]]
  $region22: #{tpu_custom_call.1} parent=0
    _
  %s6 = ssub.s32 1, %s4
  %s7 = scalar_select 0, %s6, %s4
  $region1: #{tpu_custom_call.1} parent=0
    #allocation2 [shape = 'u8[4096]{0}', space=vmem, size = 0x1000, scoped, tag = 'output window, operand 0, single buffered']
    #allocation3 [shape = 's32[1]{0}', space=sflag, size = 0x4, scoped, tag = 'scoped memory for tpu_custom_call.1']
    %8 = vsyncpa [#allocation3], 0
    // Predicated region
    $region2: #{tpu_custom_call.1} parent=1 // pred_check
      _
    $region3: #{tpu_custom_call.1} parent=1 // pred_check_branch
      %10 = sbr.rel (0) target = $region5
    $region4: #{tpu_custom_call.1} parent=1 // pred_region
      _
    $region5: #{tpu_custom_call.1} parent=1 // pred_fallthru
      _
    // Predicated region
    $region6: #{tpu_custom_call.1} parent=1 // pred_check
      _
    $region7: #{tpu_custom_call.1} parent=1 // pred_check_branch
      %12 = sbr.rel (0) target = $region9
    $region8: #{tpu_custom_call.1} parent=1 // pred_region
      _
    $region9: #{tpu_custom_call.1} parent=1 // pred_fallthru
      _
    // Predicated region
    $region10: #{tpu_custom_call.1} parent=1 // pred_check
      _
    $region11: #{tpu_custom_call.1} parent=1 // pred_check_branch
      %14 = sbr.rel (0) target = $region13
    $region12: #{tpu_custom_call.1} parent=1 // pred_region
      _
    $region13: #{tpu_custom_call.1} parent=1 // pred_fallthru
      _
    %v15 = vld [vmem:[%s0] sm:$0xff]
    %v16 = vld [vmem:[%s0 + $0x8] sm:$0x7]
    %v17 = vld [vmem:[%s0 + $0x10] sm:$0xff]
    %v18 = vld [vmem:[%s0 + $0x18] sm:$0x7]
    %v19 = vld [vmem:[%s0 + $0x20] sm:$0xff]
    %v20 = vld [vmem:[%s0 + $0x28] sm:$0x7]
    %v21 = vld [vmem:[%s0 + $0x30] sm:$0xff]
    %v22 = vld [vmem:[%s0 + $0x38] sm:$0x7]
    %v23 = vld [vmem:[%s0 + $0x40] sm:$0xff]
    %v24 = vld [vmem:[%s0 + $0x48] sm:$0x7]
    %v25 = vld [vmem:[%s0 + $0x50] sm:$0xff]
    %v26 = vld [vmem:[%s0 + $0x58] sm:$0x7]
    %v27 = vld [vmem:[%s0 + $0x60] sm:$0xff]
    %v28 = vld [vmem:[%s0 + $0x68] sm:$0x7]
    %v29 = vld [vmem:[%s0 + $0x70] sm:$0xff]
    %v30 = vld [vmem:[%s0 + $0x78] sm:$0x7]
    %v31 = vlaneseq
    %v32 = vshrl.u32 %v31, 7
    %v33 = vadd.s32 %v32, 8
    %vm34 = vcmp.ge.s32.totalorder %v32, 1
    %vm35 = vcmp.ge.s32.totalorder %v33, 1
    %vm36 = vcmp.lt.s32.totalorder %v32, 9
    %vm37 = vcmp.lt.s32.totalorder %v33, 9
    %vm38 = vmand %vm34, %vm36
    %vm39 = vmand %vm35, %vm37
    %v40 = vsel %vm38, 1, 0
    %v41 = vsel %vm39, 1, 0
    %vm42 = vcmp.eq.s32.totalorder %v40, 1
    %vm43 = vcmp.eq.s32.totalorder %v41, 1
    %v44 = vsel %vm42, %v15, 0.0
    %v45 = vsel %vm43, %v16, 0.0
    %v46 = vsel %vm42, %v17, 0.0
    %v47 = vsel %vm43, %v18, 0.0
    %v48 = vsel %vm42, %v19, 0.0
    %v49 = vsel %vm43, %v20, 0.0
    %v50 = vsel %vm42, %v21, 0.0
    %v51 = vsel %vm43, %v22, 0.0
    %v52 = vsel %vm42, %v23, 0.0
    %v53 = vsel %vm43, %v24, 0.0
    %v54 = vsel %vm42, %v25, 0.0
    %v55 = vsel %vm43, %v26, 0.0
    %v56 = vsel %vm42, %v27, 0.0
    %v57 = vsel %vm43, %v28, 0.0
    %v58 = vsel %vm42, %v29, 0.0
    %v59 = vsel %vm43, %v30, 0.0
    %vm60 = vcmask 261120
    %v61 = vsel %vm60, %v44, 0.0
    %vm62 = vcmask 256000
    %v63 = vsel %vm62, %v45, 0.0
    %v64 = vadd.f32 %v61, %v63
    %v65 = vrot.slane %v64, 4
    %v66 = vadd.f32 %v64, %v65
    %v67 = vrot.slane %v66, 2
    %v68 = vadd.f32 %v66, %v67
    %v69 = vrot.slane %v68, 1
    %v70 = vadd.f32 %v68, %v69
    %v71 = vsel %vm60, %v46, 0.0
    %v72 = vsel %vm62, %v47, 0.0
    %v73 = vadd.f32 %v71, %v72
    %v74 = vrot.slane %v73, 4
    %v75 = vadd.f32 %v73, %v74
    %v76 = vrot.slane %v75, 2
    %v77 = vadd.f32 %v75, %v76
    %v78 = vrot.slane %v77, 1
    %v79 = vadd.f32 %v77, %v78
    %v80 = vsel %vm60, %v48, 0.0
    %v81 = vsel %vm62, %v49, 0.0
    %v82 = vadd.f32 %v80, %v81
    %v83 = vrot.slane %v82, 4
    %v84 = vadd.f32 %v82, %v83
    %v85 = vrot.slane %v84, 2
    %v86 = vadd.f32 %v84, %v85
    %v87 = vrot.slane %v86, 1
    %v88 = vadd.f32 %v86, %v87
    %v89 = vsel %vm60, %v50, 0.0
    %v90 = vsel %vm62, %v51, 0.0
    %v91 = vadd.f32 %v89, %v90
    %v92 = vrot.slane %v91, 4
    %v93 = vadd.f32 %v91, %v92
    %v94 = vrot.slane %v93, 2
    %v95 = vadd.f32 %v93, %v94
    %v96 = vrot.slane %v95, 1
    %v97 = vadd.f32 %v95, %v96
    %v98 = vsel %vm60, %v52, 0.0
    %v99 = vsel %vm62, %v53, 0.0
    %v100 = vadd.f32 %v98, %v99
    %v101 = vrot.slane %v100, 4
    %v102 = vadd.f32 %v100, %v101
    %v103 = vrot.slane %v102, 2
    %v104 = vadd.f32 %v102, %v103
    %v105 = vrot.slane %v104, 1
    %v106 = vadd.f32 %v104, %v105
    %v107 = vsel %vm60, %v54, 0.0
    %v108 = vsel %vm62, %v55, 0.0
    %v109 = vadd.f32 %v107, %v108
    %v110 = vrot.slane %v109, 4
    %v111 = vadd.f32 %v109, %v110
    %v112 = vrot.slane %v111, 2
    %v113 = vadd.f32 %v111, %v112
    %v114 = vrot.slane %v113, 1
    %v115 = vadd.f32 %v113, %v114
    %v116 = vsel %vm60, %v56, 0.0
    %v117 = vsel %vm62, %v57, 0.0
    %v118 = vadd.f32 %v116, %v117
    %v119 = vrot.slane %v118, 4
    %v120 = vadd.f32 %v118, %v119
    %v121 = vrot.slane %v120, 2
    %v122 = vadd.f32 %v120, %v121
    %v123 = vrot.slane %v122, 1
    %v124 = vadd.f32 %v122, %v123
    %v125 = vsel %vm60, %v58, 0.0
    %v126 = vsel %vm62, %v59, 0.0
    %v127 = vadd.f32 %v125, %v126
    %v128 = vrot.slane %v127, 4
    %v129 = vadd.f32 %v127, %v128
    %v130 = vrot.slane %v129, 2
    %v131 = vadd.f32 %v129, %v130
    %v132 = vrot.slane %v131, 1
    %v133 = vadd.f32 %v131, %v132
    %v134 = vmul.f32 %v70, 0.125
    %v135 = vmul.f32 %v79, 0.125
    %v136 = vmul.f32 %v88, 0.125
    %v137 = vmul.f32 %v97, 0.125
    %v138 = vmul.f32 %v106, 0.125
    %v139 = vmul.f32 %v115, 0.125
    %v140 = vmul.f32 %v124, 0.125
    %v141 = vmul.f32 %v133, 0.125
    %vm150 = vcmask 1041409
    %v151 = vsel %vm150, %v135, %v134
    %vm152 = vcmask 1042434
    %v153 = vsel %vm152, %v136, %v151
    %vm154 = vcmask 1043459
    %v155 = vsel %vm154, %v137, %v153
    %vm156 = vcmask 1044484
    %v157 = vsel %vm156, %v138, %v155
    %vm158 = vcmask 1045509
    %v159 = vsel %vm158, %v139, %v157
    %vm160 = vcmask 1046534
    %v161 = vsel %vm160, %v140, %v159
    %vm162 = vcmask 1047559
    %v163 = vsel %vm162, %v141, %v161
    %v165 = vsel %vm60, %v163, 0.0
    %166 = vadd.xlane.f32.xlu0 %v165
    %v167 = vpop.xlane.xlu0 %166
    %v168 = vrcp.pop 32.0
    %v169 = vmul.f32 32.0, %v168
    %v170 = vsub.f32 1.0, %v169
    %v171 = vmul.f32 %v168, %v170
    %v172 = vadd.f32 %v168, %v171
    %vm173 = vweird.f32 %v168
    %v174 = vsel %vm173, %v168, %v172
    %v175 = vmul.f32 %v167, %v174
    %v177 = vrot.slane %v175, 1
    %v178 = vrot.slane %v175, 2
    %v179 = vrot.slane %v175, 3
    %v180 = vrot.slane %v175, 4
    %v181 = vrot.slane %v175, 5
    %v182 = vrot.slane %v175, 6
    %v183 = vrot.slane %v175, 7
    %v192 = vsub.f32 %v134, %v175
    %v193 = vsub.f32 %v135, %v177
    %v194 = vsub.f32 %v136, %v178
    %v195 = vsub.f32 %v137, %v179
    %v196 = vsub.f32 %v138, %v180
    %v197 = vsub.f32 %v139, %v181
    %v198 = vsub.f32 %v140, %v182
    %v199 = vsub.f32 %v141, %v183
    %v200 = vmul.f32 %v192, %v192
    %v201 = vmul.f32 %v193, %v193
    %v202 = vmul.f32 %v194, %v194
    %v203 = vmul.f32 %v195, %v195
    %v204 = vmul.f32 %v196, %v196
    %v205 = vmul.f32 %v197, %v197
    %v206 = vmul.f32 %v198, %v198
    %v207 = vmul.f32 %v199, %v199
    %v216 = vrot.slane %v201, 7
    %v217 = vsel %vm150, %v216, %v200
    %v218 = vrot.slane %v202, 6
    %v219 = vsel %vm152, %v218, %v217
    %v220 = vrot.slane %v203, 5
    %v221 = vsel %vm154, %v220, %v219
    %v222 = vrot.slane %v204, 4
    %v223 = vsel %vm156, %v222, %v221
    %v224 = vrot.slane %v205, 3
    %v225 = vsel %vm158, %v224, %v223
    %v226 = vrot.slane %v206, 2
    %v227 = vsel %vm160, %v226, %v225
    %v228 = vrot.slane %v207, 1
    %v229 = vsel %vm162, %v228, %v227
    %v231 = vsel %vm60, %v229, 0.0
    %232 = vadd.xlane.f32.xlu0 %v231
    %v233 = vpop.xlane.xlu0 %232
    %v234 = vmul.f32 %v233, %v174
    %v235 = vadd.f32 %v234, 1e-12
    %v236 = vrsqrt.pop %v235
    %v237 = vmul.f32 %v236, %v235
    %v238 = vmul.f32 %v237, %v236
    %v239 = vmul.f32 0.5, %v238
    %v240 = vsub.f32 1.5, %v239
    %v241 = vmul.f32 %v236, %v240
    %vm242 = vweird.f32 %v235
    %vm243 = vweird.f32 %v236
    %vm244 = vmor %vm242, %vm243
    %v245 = vsel %vm244, %v236, %v241
    %v247 = vrot.slane %v245, 1
    %v248 = vrot.slane %v245, 2
    %v249 = vrot.slane %v245, 3
    %v250 = vrot.slane %v245, 4
    %v251 = vrot.slane %v245, 5
    %v252 = vrot.slane %v245, 6
    %v253 = vrot.slane %v245, 7
    %v262 = vmul.f32 %v192, %v245
    %v263 = vmul.f32 %v193, %v247
    %v264 = vmul.f32 %v194, %v248
    %v265 = vmul.f32 %v195, %v249
    %v266 = vmul.f32 %v196, %v250
    %v267 = vmul.f32 %v197, %v251
    %v268 = vmul.f32 %v198, %v252
    %v269 = vmul.f32 %v199, %v253
    %v270 = vld [vmem:[%s1] sm:$0x1]
    %v272 = vperm.slane %v270, 0
    %v274 = vmul.f32 %v262, %v272
    %v275 = vmul.f32 %v263, %v272
    %v276 = vmul.f32 %v264, %v272
    %v277 = vmul.f32 %v265, %v272
    %v278 = vmul.f32 %v266, %v272
    %v279 = vmul.f32 %v267, %v272
    %v280 = vmul.f32 %v268, %v272
    %v281 = vmul.f32 %v269, %v272
    %v282 = vld [vmem:[%s2] sm:$0x1]
    %v284 = vperm.slane %v282, 0
    %v286 = vadd.f32 %v274, %v284
    %v287 = vadd.f32 %v275, %v284
    %v288 = vadd.f32 %v276, %v284
    %v289 = vadd.f32 %v277, %v284
    %v290 = vadd.f32 %v278, %v284
    %v291 = vadd.f32 %v279, %v284
    %v292 = vadd.f32 %v280, %v284
    %v293 = vadd.f32 %v281, %v284
    %v302 = vrot.slane %v287, 7
    %v303 = vsel %vm150, %v302, %v286
    %v304 = vrot.slane %v288, 6
    %v305 = vsel %vm152, %v304, %v303
    %v306 = vrot.slane %v289, 5
    %v307 = vsel %vm154, %v306, %v305
    %v308 = vrot.slane %v290, 4
    %v309 = vsel %vm156, %v308, %v307
    %v310 = vrot.slane %v291, 3
    %v311 = vsel %vm158, %v310, %v309
    %v312 = vrot.slane %v292, 2
    %v313 = vsel %vm160, %v312, %v311
    %v314 = vrot.slane %v293, 1
    %v315 = vsel %vm162, %v314, %v313
    %317 = vst.msk [vmem:[#allocation2] sm:$0xff] %vm60, %v315
    // Predicated region
    $region14: #{tpu_custom_call.1} parent=1 // pred_check
      _
    $region15: #{tpu_custom_call.1} parent=1 // pred_check_branch
      %319 = sbr.rel (0) target = $region17
    $region16: #{tpu_custom_call.1} parent=1 // pred_region
      %321 = vsyncadd [#allocation3], 0
      %s323 = sshll.u32 [#allocation2], 4
      %s324 = int_to_ptr.vmem [resolvable:$true] %s323
      %s325 = sshll.u32 %s3, 4
      %s326 = int_to_ptr.hbm [resolvable:$true] %s325
      %328 = dma.vmem_to_hbm [thread:$0]  %s324, 128, %s326, [#allocation3]
    $region17: #{tpu_custom_call.1} parent=1 // pred_fallthru
      _
    // Predicated region
    $region18: #{tpu_custom_call.1} parent=1 // pred_check
      _
    $region19: #{tpu_custom_call.1} parent=1 // pred_check_branch
      %330 = sbr.rel (0) target = $region21
    $region20: #{tpu_custom_call.1} parent=1 // pred_region
      %332 = dma.done [#allocation3], 128
    $region21: #{tpu_custom_call.1} parent=1 // pred_fallthru
      _
    %333 = vsyncpa [#allocation3], 1

</llo_original>
